<compile_context>
chip_gen: v7x
topology: tpu7x:2x2x1
jax: 0.10.0
libtpu: 0.0.40
codegen_flags: <defaults>
</compile_context>

<pallas_src>
import jax
import jax.numpy as jnp
from jax.experimental import pallas as pl
from jax.experimental.pallas import tpu as pltpu

EPS = 1e-5   # nn.BatchNorm1d default eps
F_PAD = 128  # lane-dense padded feature width


def gcn_kernel(x_ref, an_ref, ai_ref, wp_ref, w1_ref, w2_ref, vec_ref,
               o_ref, m1_ref, acc_ref):
    i = pl.program_id(0)
    n_i = pl.num_programs(0)

    # ---- once, at the first dst-row tile: proj + folded BatchNorm + W1 ----
    @pl.when(i == 0)
    def _():
        bp = vec_ref[0:1, :]
        gamma = vec_ref[1:2, :]
        beta = vec_ref[2:3, :]
        # proj: Linear(input_dim, hidden_dim)   (bf16 MXU, f32 accumulate)
        h = jnp.dot(x_ref[...], wp_ref[...],
                    preferred_element_type=jnp.float32) + bp
        # BatchNorm1d training stats folded into one affine (scale, shift)
        mean = jnp.mean(h, axis=0, keepdims=True)
        var = jnp.mean((h - mean) ** 2, axis=0, keepdims=True)
        scale = gamma * jax.lax.rsqrt(var + EPS)
        shift = beta - mean * scale
        h_norm = h * scale + shift
        # first GCN feature transform for ALL source nodes: m1 = BN(h) @ W1
        m1 = jnp.dot(h_norm.astype(jnp.bfloat16), w1_ref[...],
                     preferred_element_type=jnp.float32)
        m1_ref[...] = m1.astype(jnp.bfloat16)
        acc_ref[...] = jnp.zeros_like(acc_ref)

    b1 = vec_ref[3:4, :]
    # ---- GCN layer 1 aggregation for this dst-row tile ----
    # z1 = (D^-1/2 A_hat D^-1/2)[tile, :] @ m1 + b1
    z1 = jnp.dot(an_ref[...], m1_ref[...],
                 preferred_element_type=jnp.float32) + b1
    # ---- GCN layer 2 feature transform for this (source) tile ----
    m2 = jnp.dot(z1.astype(jnp.bfloat16), w2_ref[...],
                 preferred_element_type=jnp.float32)
    # ---- partial idx-row aggregation of layer 2 ----
    acc_ref[...] += jnp.dot(ai_ref[...], m2.astype(jnp.bfloat16),
                            preferred_element_type=jnp.float32)

    @pl.when(i == n_i - 1)
    def _():
        b2 = vec_ref[4:5, :]
        o_ref[...] = acc_ref[...] + b2


def _pad2(m, rows, cols, dtype):
    out = jnp.zeros((rows, cols), dtype)
    return out.at[:m.shape[0], :m.shape[1]].set(m.astype(dtype))


def _pick_tile(n):
    # largest candidate tile that exactly divides N (no row padding -> BN
    # statistics stay exact); falls back to the whole graph in one tile.
    for t in (512, 256, 128, 64, 32, 16, 8):
        if t <= n and n % t == 0:
            return t
    return n


def gcn_forward(x, a_hat, params, idx):
    N, Din = x.shape
    H = params["wp"].shape[1]
    O = params["w1"].shape[1]
    n_idx = idx.shape[0]
    assert Din <= F_PAD and H <= F_PAD and O <= F_PAD
    NI = ((n_idx + 7) // 8) * 8  # sublane-aligned output rows

    # --- graph normalization precomputed once (static graph):
    #     A_norm = D^-1/2 A_hat D^-1/2
    deg = jnp.sum(a_hat, axis=1, keepdims=True)           # >= 1 (self loops)
    dis = jax.lax.rsqrt(deg)
    a_norm = (dis * a_hat * dis.T).astype(jnp.bfloat16)   # (N, N), bf16
    a_idx = jnp.zeros((NI, N), jnp.bfloat16).at[:n_idx].set(a_norm[idx])

    # --- lane-dense zero padding of features / weights to 128 lanes, bf16 ---
    xp = _pad2(x, N, F_PAD, jnp.bfloat16)
    wp = _pad2(params["wp"], F_PAD, F_PAD, jnp.bfloat16)
    w1 = _pad2(params["w1"], F_PAD, F_PAD, jnp.bfloat16)
    w2 = _pad2(params["w2"], F_PAD, F_PAD, jnp.bfloat16)

    # --- pack the five small parameter vectors into one (8, 128) f32 slab ---
    vecs = jnp.zeros((8, F_PAD), jnp.float32)
    vecs = vecs.at[0, :H].set(params["bp"].reshape(-1))
    vecs = vecs.at[1, :H].set(params["gamma"].reshape(-1))
    vecs = vecs.at[2, :H].set(params["beta"].reshape(-1))
    vecs = vecs.at[3, :O].set(params["b1"].reshape(-1))
    vecs = vecs.at[4, :O].set(params["b2"].reshape(-1))

    # destination-row tiling of the N^2 adjacency (the only term growing as
    # N^2); everything else stays small / VMEM resident.
    TILE = _pick_tile(N)
    grid = (N // TILE,)

    out = pl.pallas_call(
        gcn_kernel,
        out_shape=jax.ShapeDtypeStruct((NI, F_PAD), jnp.float32),
        grid_spec=pltpu.PrefetchScalarGridSpec(
            num_scalar_prefetch=0,
            grid=grid,
            in_specs=[
                pl.BlockSpec((N, F_PAD), lambda i: (0, 0)),      # x (resident)
                pl.BlockSpec((TILE, N), lambda i: (i, 0)),       # A_norm row tile
                pl.BlockSpec((NI, TILE), lambda i: (0, i)),      # A_norm[idx] col tile
                pl.BlockSpec((F_PAD, F_PAD), lambda i: (0, 0)),  # Wp
                pl.BlockSpec((F_PAD, F_PAD), lambda i: (0, 0)),  # W1
                pl.BlockSpec((F_PAD, F_PAD), lambda i: (0, 0)),  # W2
                pl.BlockSpec((8, F_PAD), lambda i: (0, 0)),      # packed vectors
            ],
            out_specs=pl.BlockSpec((NI, F_PAD), lambda i: (0, 0)),
            scratch_shapes=[
                pltpu.VMEM((N, F_PAD), jnp.bfloat16),   # m1 = BN(h) @ W1 (all nodes)
                pltpu.VMEM((NI, F_PAD), jnp.float32),   # idx-row accumulator
            ],
        ),
        compiler_params=pltpu.CompilerParams(
            # the row-tile axis is a reduction into the idx-row accumulator
            dimension_semantics=("arbitrary",),
            vmem_limit_bytes=32 * 1024 * 1024,
        ),
    )(xp, a_norm, a_idx, wp, w1, w2, vecs)

    # strip lane / sublane padding (cheap glue)
    return out[:n_idx, :O]


def ref_forward(x, a_hat, p, idx):
    """Pure-f32 JAX reference of the module's forward semantics."""
    h = x @ p["wp"] + p["bp"]
    mean = h.mean(0, keepdims=True)
    var = ((h - mean) ** 2).mean(0, keepdims=True)
    h = (h - mean) / jnp.sqrt(var + EPS) * p["gamma"] + p["beta"]
    deg = a_hat.sum(1, keepdims=True)
    dis = 1.0 / jnp.sqrt(deg)
    for w, b in ((p["w1"], p["b1"]), (p["w2"], p["b2"])):
        h = dis * (a_hat @ (dis * (h @ w))) + b
    return h[idx]


def glorot(key, shape):
    fan_in, fan_out = shape
    lim = jnp.sqrt(6.0 / (fan_in + fan_out))
    return jax.random.uniform(key, shape, jnp.float32, -lim, lim)


if __name__ == "__main__":
    N, E = 64, 256                        # nodes, edges
    input_dim, hidden_dim, output_dim = 32, 32, 16
    n_idx = 8

    key = jax.random.PRNGKey(0)
    kx, ks, kd, ki, kp, kbp, k1, k2 = jax.random.split(key, 8)

    # node features
    x = jax.random.normal(kx, (N, input_dim), jnp.float32)

    # random edge_index [2, E]; dense adjacency keeps duplicate-edge
    # multiplicity (matches PyG message/degree counting), then add remaining
    # self loops (PyG gcn_norm uses add_remaining_self_loops).
    src = jax.random.randint(ks, (E,), 0, N)
    dst = jax.random.randint(kd, (E,), 0, N)
    edge_index = jnp.stack([src, dst])    # kept for shape fidelity with the module
    a_hat = jnp.zeros((N, N), jnp.float32).at[dst, src].add(1.0)
    diag = jnp.arange(N)
    a_hat = a_hat.at[diag, diag].add(jnp.where(a_hat[diag, diag] == 0.0, 1.0, 0.0))

    # query node indices
    idx = jax.random.permutation(ki, N)[:n_idx]

    # deterministic parameter init (shapes from the module __init__)
    params = {
        # proj = nn.Linear(input_dim, hidden_dim): weight stored pre-transposed
        "wp": glorot(kp, (input_dim, hidden_dim)),
        "bp": jax.random.normal(kbp, (1, hidden_dim), jnp.float32) * 0.1,
        # BatchNorm1d(hidden_dim) affine params
        "gamma": jnp.ones((1, hidden_dim), jnp.float32),
        "beta": jnp.zeros((1, hidden_dim), jnp.float32),
        # GCNConv(hidden_dim, output_dim): weight [H, O], bias zeros
        "w1": glorot(k1, (hidden_dim, output_dim)),
        "b1": jnp.zeros((1, output_dim), jnp.float32),
        # GCNConv(output_dim, output_dim)
        "w2": glorot(k2, (output_dim, output_dim)),
        "b2": jnp.zeros((1, output_dim), jnp.float32),
    }

    out = jax.block_until_ready(gcn_forward(x, a_hat, params, idx))
    ref = ref_forward(x, a_hat, params, idx)

    assert out.shape == (n_idx, output_dim), out.shape
    # bf16 MXU operands vs f32 reference -> bf16-appropriate tolerance
    max_err = float(jnp.max(jnp.abs(out - ref)))
    assert jnp.allclose(out, ref, atol=5e-2, rtol=5e-2), max_err

    print("KERNEL_OK")
</pallas_src>

<mosaic_0001>
module attributes {stable_mosaic.version = 11 : i64} {
  func.func @gcn_kernel(%arg0: i32, %arg1: memref<64x128xbf16, #tpu.memory_space<vmem>>, %arg2: memref<64x64xbf16, #tpu.memory_space<vmem>>, %arg3: memref<8x64xbf16, #tpu.memory_space<vmem>>, %arg4: memref<128x128xbf16, #tpu.memory_space<vmem>>, %arg5: memref<128x128xbf16, #tpu.memory_space<vmem>>, %arg6: memref<128x128xbf16, #tpu.memory_space<vmem>>, %arg7: memref<8x128xf32, #tpu.memory_space<vmem>>, %arg8: memref<8x128xf32, #tpu.memory_space<vmem>>, %arg9: memref<64x128xbf16, #tpu.memory_space<vmem>>, %arg10: memref<8x128xf32, #tpu.memory_space<vmem>>) attributes {dimension_semantics = [#tpu.dimension_semantics<arbitrary>], iteration_bounds = array<i64: 1>, scalar_prefetch = 0 : i64, scratch_operands = 2 : i64, tpu.core_type = #tpu.core_type<tc>, window_params = [{pipeline_mode = #tpu.pipeline_mode<synchronous>, transform_indices = @transform_0, window_bounds = array<i64: 64, 128>}, {transform_indices = @transform_1, window_bounds = array<i64: 64, 64>}, {transform_indices = @transform_2, window_bounds = array<i64: 8, 64>}, {pipeline_mode = #tpu.pipeline_mode<synchronous>, transform_indices = @transform_3, window_bounds = array<i64: 128, 128>}, {pipeline_mode = #tpu.pipeline_mode<synchronous>, transform_indices = @transform_4, window_bounds = array<i64: 128, 128>}, {pipeline_mode = #tpu.pipeline_mode<synchronous>, transform_indices = @transform_5, window_bounds = array<i64: 128, 128>}, {pipeline_mode = #tpu.pipeline_mode<synchronous>, transform_indices = @transform_6, window_bounds = array<i64: 8, 128>}, {pipeline_mode = #tpu.pipeline_mode<synchronous>, transform_indices = @transform_7, window_bounds = array<i64: 8, 128>}]} {
    %c0_i32 = arith.constant 0 : i32
    %0 = arith.cmpi eq, %arg0, %c0_i32 : i32
    %1 = arith.extui %0 : i1 to i32
    %c0_i32_0 = arith.constant 0 : i32
    %2 = arith.cmpi ne, %1, %c0_i32_0 : i32
    scf.if %2 {
      %c0_17 = arith.constant 0 : index
      %c0_18 = arith.constant 0 : index
      %21 = vector.load %arg7[%c0_17, %c0_18] : memref<8x128xf32, #tpu.memory_space<vmem>>, vector<1x128xf32>
      %c1 = arith.constant 1 : index
      %c0_19 = arith.constant 0 : index
      %22 = vector.load %arg7[%c1, %c0_19] : memref<8x128xf32, #tpu.memory_space<vmem>>, vector<1x128xf32>
      %c2 = arith.constant 2 : index
      %c0_20 = arith.constant 0 : index
      %23 = vector.load %arg7[%c2, %c0_20] : memref<8x128xf32, #tpu.memory_space<vmem>>, vector<1x128xf32>
      %c0_21 = arith.constant 0 : index
      %c0_22 = arith.constant 0 : index
      %24 = vector.load %arg1[%c0_21, %c0_22] : memref<64x128xbf16, #tpu.memory_space<vmem>>, vector<64x128xbf16>
      %c0_23 = arith.constant 0 : index
      %c0_24 = arith.constant 0 : index
      %25 = vector.load %arg4[%c0_23, %c0_24] : memref<128x128xbf16, #tpu.memory_space<vmem>>, vector<128x128xbf16>
      %cst_25 = arith.constant dense<0.000000e+00> : vector<64x128xf32>
      %26 = tpu.matmul %24, %25, %cst_25 {dimension_numbers = #tpu.dot_dimension_numbers<[1], [0], [0], [1], [0, 0, 1, 1], [], []>} : vector<64x128xbf16>, vector<128x128xbf16>, vector<64x128xf32> -> vector<64x128xf32>
      %27 = vector.broadcast %21 : vector<1x128xf32> to vector<64x128xf32>
      %28 = arith.addf %26, %27 : vector<64x128xf32>
      %cst_26 = arith.constant dense<0.000000e+00> : vector<128xf32>
      %29 = vector.multi_reduction <add>, %28, %cst_26 [0] : vector<64x128xf32> to vector<128xf32>
      %30 = vector.shape_cast %29 : vector<128xf32> to vector<1x128xf32>
      %cst_27 = arith.constant 6.400000e+01 : f32
      %31 = vector.broadcast %cst_27 : f32 to vector<1x128xf32>
      %32 = arith.divf %30, %31 : vector<1x128xf32>
      %33 = vector.broadcast %32 : vector<1x128xf32> to vector<64x128xf32>
      %34 = arith.subf %28, %33 : vector<64x128xf32>
      %35 = arith.mulf %34, %34 : vector<64x128xf32>
      %cst_28 = arith.constant dense<0.000000e+00> : vector<128xf32>
      %36 = vector.multi_reduction <add>, %35, %cst_28 [0] : vector<64x128xf32> to vector<128xf32>
      %37 = vector.shape_cast %36 : vector<128xf32> to vector<1x128xf32>
      %cst_29 = arith.constant 6.400000e+01 : f32
      %38 = vector.broadcast %cst_29 : f32 to vector<1x128xf32>
      %39 = arith.divf %37, %38 : vector<1x128xf32>
      %cst_30 = arith.constant 9.99999974E-6 : f32
      %40 = vector.broadcast %cst_30 : f32 to vector<1x128xf32>
      %41 = arith.addf %39, %40 : vector<1x128xf32>
      %42 = math.rsqrt %41 : vector<1x128xf32>
      %43 = arith.mulf %22, %42 : vector<1x128xf32>
      %44 = arith.mulf %32, %43 : vector<1x128xf32>
      %45 = arith.subf %23, %44 : vector<1x128xf32>
      %46 = vector.broadcast %43 : vector<1x128xf32> to vector<64x128xf32>
      %47 = arith.mulf %28, %46 : vector<64x128xf32>
      %48 = vector.broadcast %45 : vector<1x128xf32> to vector<64x128xf32>
      %49 = arith.addf %47, %48 : vector<64x128xf32>
      %50 = arith.truncf %49 : vector<64x128xf32> to vector<64x128xbf16>
      %c0_31 = arith.constant 0 : index
      %c0_32 = arith.constant 0 : index
      %51 = vector.load %arg5[%c0_31, %c0_32] : memref<128x128xbf16, #tpu.memory_space<vmem>>, vector<128x128xbf16>
      %cst_33 = arith.constant dense<0.000000e+00> : vector<64x128xf32>
      %52 = tpu.matmul %50, %51, %cst_33 {dimension_numbers = #tpu.dot_dimension_numbers<[1], [0], [0], [1], [0, 0, 1, 1], [], []>} : vector<64x128xbf16>, vector<128x128xbf16>, vector<64x128xf32> -> vector<64x128xf32>
      %53 = arith.truncf %52 : vector<64x128xf32> to vector<64x128xbf16>
      %c0_34 = arith.constant 0 : index
      %c0_35 = arith.constant 0 : index
      %54 = vector.load %arg9[%c0_34, %c0_35] : memref<64x128xbf16, #tpu.memory_space<vmem>>, vector<64x128xbf16>
      tpu.vector_store %arg9[%c0_34, %c0_35], %53 {strides = array<i32>} : memref<64x128xbf16, #tpu.memory_space<vmem>>, vector<64x128xbf16>,
      %cst_36 = arith.constant 0.000000e+00 : f32
      %55 = vector.broadcast %cst_36 : f32 to vector<8x128xf32>
      %c0_37 = arith.constant 0 : index
      %c0_38 = arith.constant 0 : index
      %56 = vector.load %arg10[%c0_37, %c0_38] : memref<8x128xf32, #tpu.memory_space<vmem>>, vector<8x128xf32>
      tpu.vector_store %arg10[%c0_37, %c0_38], %55 {strides = array<i32>} : memref<8x128xf32, #tpu.memory_space<vmem>>, vector<8x128xf32>,
    } else {
    }
    %c3 = arith.constant 3 : index
    %c0 = arith.constant 0 : index
    %3 = vector.load %arg7[%c3, %c0] : memref<8x128xf32, #tpu.memory_space<vmem>>, vector<1x128xf32>
    %c0_1 = arith.constant 0 : index
    %c0_2 = arith.constant 0 : index
    %4 = vector.load %arg2[%c0_1, %c0_2] : memref<64x64xbf16, #tpu.memory_space<vmem>>, vector<64x64xbf16>
    %c0_3 = arith.constant 0 : index
    %c0_4 = arith.constant 0 : index
    %5 = vector.load %arg9[%c0_3, %c0_4] : memref<64x128xbf16, #tpu.memory_space<vmem>>, vector<64x128xbf16>
    %cst = arith.constant dense<0.000000e+00> : vector<64x128xf32>
    %6 = tpu.matmul %4, %5, %cst {dimension_numbers = #tpu.dot_dimension_numbers<[1], [0], [0], [1], [0, 0, 1, 1], [], []>} : vector<64x64xbf16>, vector<64x128xbf16>, vector<64x128xf32> -> vector<64x128xf32>
    %7 = vector.broadcast %3 : vector<1x128xf32> to vector<64x128xf32>
    %8 = arith.addf %6, %7 : vector<64x128xf32>
    %9 = arith.truncf %8 : vector<64x128xf32> to vector<64x128xbf16>
    %c0_5 = arith.constant 0 : index
    %c0_6 = arith.constant 0 : index
    %10 = vector.load %arg6[%c0_5, %c0_6] : memref<128x128xbf16, #tpu.memory_space<vmem>>, vector<128x128xbf16>
    %cst_7 = arith.constant dense<0.000000e+00> : vector<64x128xf32>
    %11 = tpu.matmul %9, %10, %cst_7 {dimension_numbers = #tpu.dot_dimension_numbers<[1], [0], [0], [1], [0, 0, 1, 1], [], []>} : vector<64x128xbf16>, vector<128x128xbf16>, vector<64x128xf32> -> vector<64x128xf32>
    %c0_8 = arith.constant 0 : index
    %c0_9 = arith.constant 0 : index
    %12 = vector.load %arg10[%c0_8, %c0_9] : memref<8x128xf32, #tpu.memory_space<vmem>>, vector<8x128xf32>
    %c0_10 = arith.constant 0 : index
    %c0_11 = arith.constant 0 : index
    %13 = vector.load %arg3[%c0_10, %c0_11] : memref<8x64xbf16, #tpu.memory_space<vmem>>, vector<8x64xbf16>
    %14 = arith.truncf %11 : vector<64x128xf32> to vector<64x128xbf16>
    %cst_12 = arith.constant dense<0.000000e+00> : vector<8x128xf32>
    %15 = tpu.matmul %13, %14, %cst_12 {dimension_numbers = #tpu.dot_dimension_numbers<[1], [0], [0], [1], [0, 0, 1, 1], [], []>} : vector<8x64xbf16>, vector<64x128xbf16>, vector<8x128xf32> -> vector<8x128xf32>
    %16 = arith.addf %12, %15 : vector<8x128xf32>
    %c0_13 = arith.constant 0 : index
    %c0_14 = arith.constant 0 : index
    %17 = vector.load %arg10[%c0_13, %c0_14] : memref<8x128xf32, #tpu.memory_space<vmem>>, vector<8x128xf32>
    tpu.vector_store %arg10[%c0_13, %c0_14], %16 {strides = array<i32>} : memref<8x128xf32, #tpu.memory_space<vmem>>, vector<8x128xf32>,
    %c0_i32_15 = arith.constant 0 : i32
    %18 = arith.cmpi eq, %arg0, %c0_i32_15 : i32
    %19 = arith.extui %18 : i1 to i32
    %c0_i32_16 = arith.constant 0 : i32
    %20 = arith.cmpi ne, %19, %c0_i32_16 : i32
    scf.if %20 {
      %c4 = arith.constant 4 : index
      %c0_17 = arith.constant 0 : index
      %21 = vector.load %arg7[%c4, %c0_17] : memref<8x128xf32, #tpu.memory_space<vmem>>, vector<1x128xf32>
      %c0_18 = arith.constant 0 : index
      %c0_19 = arith.constant 0 : index
      %22 = vector.load %arg10[%c0_18, %c0_19] : memref<8x128xf32, #tpu.memory_space<vmem>>, vector<8x128xf32>
      %23 = vector.broadcast %21 : vector<1x128xf32> to vector<8x128xf32>
      %24 = arith.addf %22, %23 : vector<8x128xf32>
      %c0_20 = arith.constant 0 : index
      %c0_21 = arith.constant 0 : index
      %25 = vector.load %arg8[%c0_20, %c0_21] : memref<8x128xf32, #tpu.memory_space<vmem>>, vector<8x128xf32>
      tpu.vector_store %arg8[%c0_20, %c0_21], %24 {strides = array<i32>} : memref<8x128xf32, #tpu.memory_space<vmem>>, vector<8x128xf32>,
    } else {
    }
    return
  }
  func.func @transform_0(%arg0: i32) -> (i32, i32) {
    %c0_i32 = arith.constant 0 : i32
    %c0_i32_0 = arith.constant 0 : i32
    %c0_i32_1 = arith.constant 0 : i32
    return %c0_i32, %c0_i32_0 : i32, i32
  }
  func.func @transform_1(%arg0: i32) -> (i32, i32) {
    %c0_i32 = arith.constant 0 : i32
    %c0_i32_0 = arith.constant 0 : i32
    return %arg0, %c0_i32 : i32, i32
  }
  func.func @transform_2(%arg0: i32) -> (i32, i32) {
    %c0_i32 = arith.constant 0 : i32
    %c0_i32_0 = arith.constant 0 : i32
    return %c0_i32, %arg0 : i32, i32
  }
  func.func @transform_3(%arg0: i32) -> (i32, i32) {
    %c0_i32 = arith.constant 0 : i32
    %c0_i32_0 = arith.constant 0 : i32
    %c0_i32_1 = arith.constant 0 : i32
    return %c0_i32, %c0_i32_0 : i32, i32
  }
  func.func @transform_4(%arg0: i32) -> (i32, i32) {
    %c0_i32 = arith.constant 0 : i32
    %c0_i32_0 = arith.constant 0 : i32
    %c0_i32_1 = arith.constant 0 : i32
    return %c0_i32, %c0_i32_0 : i32, i32
  }
  func.func @transform_5(%arg0: i32) -> (i32, i32) {
    %c0_i32 = arith.constant 0 : i32
    %c0_i32_0 = arith.constant 0 : i32
    %c0_i32_1 = arith.constant 0 : i32
    return %c0_i32, %c0_i32_0 : i32, i32
  }
  func.func @transform_6(%arg0: i32) -> (i32, i32) {
    %c0_i32 = arith.constant 0 : i32
    %c0_i32_0 = arith.constant 0 : i32
    %c0_i32_1 = arith.constant 0 : i32
    return %c0_i32, %c0_i32_0 : i32, i32
  }
  func.func @transform_7(%arg0: i32) -> (i32, i32) {
    %c0_i32 = arith.constant 0 : i32
    %c0_i32_0 = arith.constant 0 : i32
    %c0_i32_1 = arith.constant 0 : i32
    return %c0_i32, %c0_i32_0 : i32, i32
  }
}

</mosaic_0001>

<llo_original>
// kernel: tpu_custom_call.1
$region0: #{tpu_custom_call.1}
  #allocation0 [shape = 'u32[]', space=smem, size = 0x4, offset = 0x4, fixed_abs, tag = 'smem constant byte address 0x4 - core index']
  #allocation1 [shape = 'u32[144,128]{1,0:T(1,128)}', space=vmem, size = 0x12000, scoped, tag = 'internal scratch']
  #allocation2 [shape = 'bf16[64,128]{1,0:T(16,128)(2,1)}', space=vmem, size = 0x4000, scoped, tag = 'scratch operand']
  #allocation3 [shape = 'f32[8,128]{1,0:T(8,128)}', space=vmem, size = 0x1000, scoped, tag = 'scratch operand']
  %s0 = inlined_call_operand.hbm [shape: bf16[64,128], index: 0, kind: input, shape index: {}]
  %s1 = inlined_call_operand.hbm [shape: bf16[64,64], index: 1, kind: input, shape index: {}]
  %s2 = inlined_call_operand.vmem [shape: bf16[8,64], index: 2, kind: input, shape index: {}]
  %s3 = inlined_call_operand.hbm [shape: bf16[128,128], index: 3, kind: input, shape index: {}]
  %s4 = inlined_call_operand.hbm [shape: bf16[128,128], index: 4, kind: input, shape index: {}]
  %s5 = inlined_call_operand.hbm [shape: bf16[128,128], index: 5, kind: input, shape index: {}]
  %s6 = inlined_call_operand.vmem [shape: f32[8,128], index: 6, kind: input, shape index: {}]
  %s7 = inlined_call_operand.hbm [shape: f32[8,128], index: 7, kind: output, shape index: {}]
  %s8 = sld [smem:[#allocation0]]
  $region66: #{tpu_custom_call.1} parent=0
    _
  %s10 = ssub.s32 1, %s8
  %s11 = scalar_select 0, %s10, %s8
  $region1: #{tpu_custom_call.1} parent=0
    #allocation4 [shape = 'u8[16384]{0}', space=vmem, size = 0x4000, scoped, tag = 'input window, operand 0, single buffered']
    #allocation5 [shape = 's32[1]{0}', space=sflag, size = 0x4, scoped, tag = 'scoped memory for tpu_custom_call.1']
    #allocation6 [shape = 's32[1]{0}', space=sflag, size = 0x4, scoped, tag = 'scoped memory for tpu_custom_call.1']
    #allocation7 [shape = 'u8[16384]{0}', space=vmem, size = 0x4000, scoped, tag = 'input window, operand 1, single buffered']
    #allocation8 [shape = 's32[1]{0}', space=sflag, size = 0x4, scoped, tag = 'scoped memory for tpu_custom_call.1']
    #allocation9 [shape = 'u8[32768]{0}', space=vmem, size = 0x8000, scoped, tag = 'input window, operand 3, single buffered']
    #allocation10 [shape = 'u8[32768]{0}', space=vmem, size = 0x8000, scoped, tag = 'input window, operand 4, single buffered']
    #allocation11 [shape = 's32[1]{0}', space=sflag, size = 0x4, scoped, tag = 'scoped memory for tpu_custom_call.1']
    #allocation12 [shape = 'u8[32768]{0}', space=vmem, size = 0x8000, scoped, tag = 'input window, operand 5, single buffered']
    #allocation13 [shape = 'u8[4096]{0}', space=vmem, size = 0x1000, scoped, tag = 'output window, operand 0, single buffered']
    %12 = vsyncpa [#allocation5], 0
    %13 = vsyncpa [#allocation8], 0
    %14 = vsyncpa [#allocation11], 0
    %15 = vsyncpa [#allocation6], 0
    // Predicated region
    $region2: #{tpu_custom_call.1} parent=1 // pred_check
      _
    $region3: #{tpu_custom_call.1} parent=1 // pred_check_branch
      %17 = sbr.rel (0) target = $region5
    $region4: #{tpu_custom_call.1} parent=1 // pred_region
      %s19 = ssub.s32 512, 512
      %20 = vsyncadd [#allocation5], %s19
      %s21 = sshll.u32 [#allocation4], 4
      %s22 = int_to_ptr.vmem [resolvable:$true] %s21
      %27 = dma.hbm_to_vmem [thread:$0]  %s0, 512, %s22, [#allocation5], 64, 64, 4
    $region5: #{tpu_custom_call.1} parent=1 // pred_fallthru
      _
    // Predicated region
    $region6: #{tpu_custom_call.1} parent=1 // pred_check
      _
    $region7: #{tpu_custom_call.1} parent=1 // pred_check_branch
      %29 = sbr.rel (0) target = $region9
    $region8: #{tpu_custom_call.1} parent=1 // pred_region
      %s31 = ssub.s32 512, 512
      %32 = vsyncadd [#allocation8], %s31
      %s33 = sshll.u32 [#allocation7], 4
      %s34 = int_to_ptr.vmem [resolvable:$true] %s33
      %39 = dma.hbm_to_vmem [thread:$0]  %s1, 512, %s34, [#allocation8], 64, 64, 4
    $region9: #{tpu_custom_call.1} parent=1 // pred_fallthru
      _
    // Predicated region
    $region10: #{tpu_custom_call.1} parent=1 // pred_check
      _
    $region11: #{tpu_custom_call.1} parent=1 // pred_check_branch
      %41 = sbr.rel (0) target = $region13
    $region12: #{tpu_custom_call.1} parent=1 // pred_region
      _
    $region13: #{tpu_custom_call.1} parent=1 // pred_fallthru
      _
    // Predicated region
    $region14: #{tpu_custom_call.1} parent=1 // pred_check
      _
    $region15: #{tpu_custom_call.1} parent=1 // pred_check_branch
      %43 = sbr.rel (0) target = $region17
    $region16: #{tpu_custom_call.1} parent=1 // pred_region
      %s45 = ssub.s32 1024, 1024
      %46 = vsyncadd [#allocation8], %s45
      %s47 = sshll.u32 [#allocation9], 4
      %s48 = int_to_ptr.vmem [resolvable:$true] %s47
      %53 = dma.hbm_to_vmem [thread:$0]  %s3, 1024, %s48, [#allocation8], 64, 64, 4
    $region17: #{tpu_custom_call.1} parent=1 // pred_fallthru
      _
    // Predicated region
    $region18: #{tpu_custom_call.1} parent=1 // pred_check
      _
    $region19: #{tpu_custom_call.1} parent=1 // pred_check_branch
      %55 = sbr.rel (0) target = $region21
    $region20: #{tpu_custom_call.1} parent=1 // pred_region
      %s57 = ssub.s32 1024, 1024
      %58 = vsyncadd [#allocation11], %s57
      %s59 = sshll.u32 [#allocation10], 4
      %s60 = int_to_ptr.vmem [resolvable:$true] %s59
      %65 = dma.hbm_to_vmem [thread:$0]  %s4, 1024, %s60, [#allocation11], 64, 64, 4
    $region21: #{tpu_custom_call.1} parent=1 // pred_fallthru
      _
    // Predicated region
    $region22: #{tpu_custom_call.1} parent=1 // pred_check
      _
    $region23: #{tpu_custom_call.1} parent=1 // pred_check_branch
      %67 = sbr.rel (0) target = $region25
    $region24: #{tpu_custom_call.1} parent=1 // pred_region
      %s69 = ssub.s32 1024, 1024
      %70 = vsyncadd [#allocation11], %s69
      %s71 = sshll.u32 [#allocation12], 4
      %s72 = int_to_ptr.vmem [resolvable:$true] %s71
      %77 = dma.hbm_to_vmem [thread:$0]  %s5, 1024, %s72, [#allocation11], 64, 64, 4
    $region25: #{tpu_custom_call.1} parent=1 // pred_fallthru
      _
    // Predicated region
    $region26: #{tpu_custom_call.1} parent=1 // pred_check
      _
    $region27: #{tpu_custom_call.1} parent=1 // pred_check_branch
      %79 = sbr.rel (0) target = $region29
    $region28: #{tpu_custom_call.1} parent=1 // pred_region
      _
    $region29: #{tpu_custom_call.1} parent=1 // pred_fallthru
      _
    // Predicated region
    $region30: #{tpu_custom_call.1} parent=1 // pred_check
      _
    $region31: #{tpu_custom_call.1} parent=1 // pred_check_branch
      %81 = sbr.rel (0) target = $region33
    $region32: #{tpu_custom_call.1} parent=1 // pred_region
      %82 = dma.done [#allocation5], 512
    $region33: #{tpu_custom_call.1} parent=1 // pred_fallthru
      _
    // Predicated region
    $region34: #{tpu_custom_call.1} parent=1 // pred_check
      _
    $region35: #{tpu_custom_call.1} parent=1 // pred_check_branch
      %84 = sbr.rel (0) target = $region37
    $region36: #{tpu_custom_call.1} parent=1 // pred_region
      %85 = dma.done [#allocation8], 512
    $region37: #{tpu_custom_call.1} parent=1 // pred_fallthru
      _
    // Predicated region
    $region38: #{tpu_custom_call.1} parent=1 // pred_check
      _
    $region39: #{tpu_custom_call.1} parent=1 // pred_check_branch
      %87 = sbr.rel (0) target = $region41
    $region40: #{tpu_custom_call.1} parent=1 // pred_region
      %88 = dma.done [#allocation8], 1024
    $region41: #{tpu_custom_call.1} parent=1 // pred_fallthru
      _
    // Predicated region
    $region42: #{tpu_custom_call.1} parent=1 // pred_check
      _
    $region43: #{tpu_custom_call.1} parent=1 // pred_check_branch
      %90 = sbr.rel (0) target = $region45
    $region44: #{tpu_custom_call.1} parent=1 // pred_region
      %91 = dma.done [#allocation11], 1024
    $region45: #{tpu_custom_call.1} parent=1 // pred_fallthru
      _
    // Predicated region
    $region46: #{tpu_custom_call.1} parent=1 // pred_check
      _
    $region47: #{tpu_custom_call.1} parent=1 // pred_check_branch
      %93 = sbr.rel (0) target = $region49
    $region48: #{tpu_custom_call.1} parent=1 // pred_region
      %94 = dma.done [#allocation11], 1024
    $region49: #{tpu_custom_call.1} parent=1 // pred_fallthru
      _
    %p96 = scmp.eq.s32.totalorder 0, 0
    // Predicated region
    $region50: #{tpu_custom_call.1} parent=1 // pred_check
      %p97 = pneg %p96
    $region51: #{tpu_custom_call.1} parent=1 // pred_check_branch
      %99 = sbr.rel (%p97) target = $region53
    $region52: #{tpu_custom_call.1} parent=1 // pred_region
      %v100 = vld [vmem:[%s6] sm:$0x1]
      %v101 = vld [vmem:[%s6 + $0x1] sm:$0x1]
      %v102 = vld [vmem:[%s6 + $0x2] sm:$0x1]
      %v103 = vld [vmem:[#allocation4] sm:$0xf]
      %v104 = vld [vmem:[#allocation4 + $0x4] sm:$0xf]
      %v105 = vld [vmem:[#allocation4 + $0x8] sm:$0xf]
      %v106 = vld [vmem:[#allocation4 + $0xc] sm:$0xf]
      %v107 = vld [vmem:[#allocation4 + $0x10] sm:$0xf]
      %v108 = vld [vmem:[#allocation4 + $0x14] sm:$0xf]
      %v109 = vld [vmem:[#allocation4 + $0x18] sm:$0xf]
      %v110 = vld [vmem:[#allocation4 + $0x1c] sm:$0xf]
      %v111 = vld [vmem:[#allocation9] sm:$0xf]
      %v112 = vld [vmem:[#allocation9 + $0x4] sm:$0xf]
      %v113 = vld [vmem:[#allocation9 + $0x8] sm:$0xf]
      %v114 = vld [vmem:[#allocation9 + $0xc] sm:$0xf]
      %v115 = vld [vmem:[#allocation9 + $0x10] sm:$0xf]
      %v116 = vld [vmem:[#allocation9 + $0x14] sm:$0xf]
      %v117 = vld [vmem:[#allocation9 + $0x18] sm:$0xf]
      %v118 = vld [vmem:[#allocation9 + $0x1c] sm:$0xf]
      %v119 = vld [vmem:[#allocation9 + $0x20] sm:$0xf]
      %v120 = vld [vmem:[#allocation9 + $0x24] sm:$0xf]
      %v121 = vld [vmem:[#allocation9 + $0x28] sm:$0xf]
      %v122 = vld [vmem:[#allocation9 + $0x2c] sm:$0xf]
      %v123 = vld [vmem:[#allocation9 + $0x30] sm:$0xf]
      %v124 = vld [vmem:[#allocation9 + $0x34] sm:$0xf]
      %v125 = vld [vmem:[#allocation9 + $0x38] sm:$0xf]
      %v126 = vld [vmem:[#allocation9 + $0x3c] sm:$0xf]
      %v127 = vlaneseq
      %v128 = vshrl.u32 %v127, 7
      %v129 = vsub.s32 0, %v128
      %v130 = vrot.slane %v100, %v129
      %v139 = vunpack.c.l.b16 %v103
      %v140 = vunpack.c.l.b16 %v104
      %v141 = vunpack.c.l.b16 %v105
      %v142 = vunpack.c.l.b16 %v106
      %v143 = vunpack.c.l.b16 %v107
      %v144 = vunpack.c.l.b16 %v108
      %v145 = vunpack.c.l.b16 %v109
      %v146 = vunpack.c.l.b16 %v110
      %v147 = vpack.c.b16 %v140, %v139
      %v148 = vpack.c.b16 %v142, %v141
      %v149 = vpack.c.b16 %v144, %v143
      %v150 = vpack.c.b16 %v146, %v145
      %v171 = vunpack.c.l.b16 %v111
      %v172 = vunpack.c.l.b16 %v112
      %v173 = vunpack.c.l.b16 %v113
      %v174 = vunpack.c.l.b16 %v114
      %v175 = vunpack.c.l.b16 %v115
      %v176 = vunpack.c.l.b16 %v116
      %v177 = vunpack.c.l.b16 %v117
      %v178 = vunpack.c.l.b16 %v118
      %v179 = vunpack.c.l.b16 %v119
      %v180 = vunpack.c.l.b16 %v120
      %v181 = vunpack.c.l.b16 %v121
      %v182 = vunpack.c.l.b16 %v122
      %v183 = vunpack.c.l.b16 %v123
      %v184 = vunpack.c.l.b16 %v124
      %v185 = vunpack.c.l.b16 %v125
      %v186 = vunpack.c.l.b16 %v126
      %v187 = vpack.c.b16 %v172, %v171
      %v188 = vpack.c.b16 %v174, %v173
      %v189 = vpack.c.b16 %v176, %v175
      %v190 = vpack.c.b16 %v178, %v177
      %v191 = vpack.c.b16 %v180, %v179
      %v192 = vpack.c.b16 %v182, %v181
      %v193 = vpack.c.b16 %v184, %v183
      %v194 = vpack.c.b16 %v186, %v185
      %203 = vmatprep.subr.bf16.mxu0 0
      %204 = vmatpush1.bf16.msra.mxu0 %v187
      %205 = vmatprep.subr.bf16.mxu0 0
      %206 = vmatpush1.bf16.msra.mxu0 %v188
      %207 = vmatprep.subr.bf16.mxu0 0
      %208 = vmatpush1.bf16.msra.mxu0 %v189
      %209 = vmatprep.subr.bf16.mxu0 0
      %210 = vmatpush1.bf16.msra.mxu0 %v190
      %211 = vmatprep.subr.bf16.mxu0 0
      %212 = vmatpush1.bf16.msra.mxu0 %v191
      %213 = vmatprep.subr.bf16.mxu0 0
      %214 = vmatpush1.bf16.msra.mxu0 %v192
      %215 = vmatprep.subr.bf16.mxu0 0
      %216 = vmatpush1.bf16.msra.mxu0 %v193
      %217 = vmatprep.subr.bf16.mxu0 0
      %218 = vmatpush1.bf16.msra.mxu0 %v194
      %219 = vmatprep.subr.bf16.mxu0 0
      %220 = vmatpush1.bf16.msra.mxu0 0
      %221 = vmatprep.subr.bf16.mxu0 0
      %222 = vmatpush1.bf16.msra.mxu0 0
      %223 = vmatprep.subr.bf16.mxu0 0
      %224 = vmatpush1.bf16.msra.mxu0 0
      %225 = vmatprep.subr.bf16.mxu0 0
      %226 = vmatpush1.bf16.msra.mxu0 0
      %227 = vmatprep.subr.bf16.mxu0 0
      %228 = vmatpush1.bf16.msra.mxu0 0
      %229 = vmatprep.subr.bf16.mxu0 0
      %230 = vmatpush1.bf16.msra.mxu0 0
      %231 = vmatprep.subr.bf16.mxu0 0
      %232 = vmatpush1.bf16.msra.mxu0 0
      %233 = vmatprep.subr.bf16.mxu0 0
      %234 = vmatpush1.bf16.msra.mxu0 0
      %235 = vmatprep.mubr.bf16.mxu0 0
      %236 = vmatmul.mubr.bf16.gmra.mrb[0].mxu0 %v147
      %v237 = vpop.f32.mrb[0].mxu0
      %v238 = vadd.f32 %v130, %v237
      %v239 = vpop.f32.mrb[0].mxu0
      %v240 = vpop.f32.mrb[0].mxu0
      %v241 = vadd.f32 %v130, %v240
      %v242 = vpop.f32.mrb[0].mxu0
      %243 = vmatprep.mubr.bf16.mxu0 0
      %244 = vmatmul.mubr.bf16.gmra.mrb[0].mxu0 %v148
      %v245 = vpop.f32.mrb[0].mxu0
      %v246 = vadd.f32 %v130, %v245
      %v247 = vpop.f32.mrb[0].mxu0
      %v248 = vpop.f32.mrb[0].mxu0
      %v249 = vadd.f32 %v130, %v248
      %v250 = vpop.f32.mrb[0].mxu0
      %251 = vmatprep.mubr.bf16.mxu0 0
      %252 = vmatmul.mubr.bf16.gmra.mrb[0].mxu0 %v149
      %v253 = vpop.f32.mrb[0].mxu0
      %v254 = vadd.f32 %v130, %v253
      %v255 = vpop.f32.mrb[0].mxu0
      %v256 = vpop.f32.mrb[0].mxu0
      %v257 = vadd.f32 %v130, %v256
      %v258 = vpop.f32.mrb[0].mxu0
      %259 = vmatprep.mubr.bf16.mxu0 0
      %260 = vmatmul.mubr.bf16.gmra.mrb[0].mxu0 %v150
      %v261 = vpop.f32.mrb[0].mxu0
      %v262 = vadd.f32 %v130, %v261
      %v263 = vpop.f32.mrb[0].mxu0
      %v264 = vpop.f32.mrb[0].mxu0
      %v265 = vadd.f32 %v130, %v264
      %v266 = vpop.f32.mrb[0].mxu0
      %267 = vdwg.mxu0
      %v268 = vadd.f32 %v238, %v241
      %v269 = vadd.f32 %v268, %v246
      %v270 = vadd.f32 %v269, %v249
      %v271 = vadd.f32 %v270, %v254
      %v272 = vadd.f32 %v271, %v257
      %v273 = vadd.f32 %v272, %v262
      %v274 = vadd.f32 %v273, %v265
      %v275 = vrot.slane %v274, 4
      %v276 = vadd.f32 %v274, %v275
      %v277 = vrot.slane %v276, 2
      %v278 = vadd.f32 %v276, %v277
      %v279 = vrot.slane %v278, 1
      %v280 = vadd.f32 %v278, %v279
      %v281 = vrcp.pop 64.0
      %v282 = vmul.f32 %v280, %v281
      %v283 = vsub.f32 %v238, %v282
      %v284 = vsub.f32 %v241, %v282
      %v285 = vsub.f32 %v246, %v282
      %v286 = vsub.f32 %v249, %v282
      %v287 = vsub.f32 %v254, %v282
      %v288 = vsub.f32 %v257, %v282
      %v289 = vsub.f32 %v262, %v282
      %v290 = vsub.f32 %v265, %v282
      %v291 = vmul.f32 %v283, %v283
      %v292 = vmul.f32 %v284, %v284
      %v293 = vmul.f32 %v285, %v285
      %v294 = vmul.f32 %v286, %v286
      %v295 = vmul.f32 %v287, %v287
      %v296 = vmul.f32 %v288, %v288
      %v297 = vmul.f32 %v289, %v289
      %v298 = vmul.f32 %v290, %v290
      %v299 = vadd.f32 %v291, %v292
      %v300 = vadd.f32 %v299, %v293
      %v301 = vadd.f32 %v300, %v294
      %v302 = vadd.f32 %v301, %v295
      %v303 = vadd.f32 %v302, %v296
      %v304 = vadd.f32 %v303, %v297
      %v305 = vadd.f32 %v304, %v298
      %v306 = vrot.slane %v305, 4
      %v307 = vadd.f32 %v305, %v306
      %v308 = vrot.slane %v307, 2
      %v309 = vadd.f32 %v307, %v308
      %v310 = vrot.slane %v309, 1
      %v311 = vadd.f32 %v309, %v310
      %v312 = vmul.f32 %v311, %v281
      %v313 = vadd.f32 %v312, 1e-05
      %v314 = vrsqrt.pop %v313
      %v315 = vmul.f32 %v101, %v314
      %v316 = vmul.f32 %v282, %v315
      %v317 = vsub.f32 %v102, %v316
      %v318 = vlaneseq
      %v319 = vshrl.u32 %v318, 7
      %v320 = vsub.s32 0, %v319
      %v321 = vrot.slane %v315, %v320
      %v322 = vmul.f32 %v238, %v321
      %v323 = vmul.f32 %v241, %v321
      %v324 = vmul.f32 %v246, %v321
      %v325 = vmul.f32 %v249, %v321
      %v326 = vmul.f32 %v254, %v321
      %v327 = vmul.f32 %v257, %v321
      %v328 = vmul.f32 %v262, %v321
      %v329 = vmul.f32 %v265, %v321
      %v330 = vlaneseq
      %v331 = vshrl.u32 %v330, 7
      %v332 = vsub.s32 0, %v331
      %v333 = vrot.slane %v317, %v332
      %v334 = vadd.f32 %v322, %v333
      %v335 = vadd.f32 %v323, %v333
      %v336 = vadd.f32 %v324, %v333
      %v337 = vadd.f32 %v325, %v333
      %v338 = vadd.f32 %v326, %v333
      %v339 = vadd.f32 %v327, %v333
      %v340 = vadd.f32 %v328, %v333
      %v341 = vadd.f32 %v329, %v333
      %v342 = vpack.c.bf16 %v335, %v334
      %v343 = vpack.c.bf16 %v337, %v336
      %v344 = vpack.c.bf16 %v339, %v338
      %v345 = vpack.c.bf16 %v341, %v340
      %v346 = vld [vmem:[#allocation10] sm:$0xf]
      %v347 = vld [vmem:[#allocation10 + $0x4] sm:$0xf]
      %v348 = vld [vmem:[#allocation10 + $0x8] sm:$0xf]
      %v349 = vld [vmem:[#allocation10 + $0xc] sm:$0xf]
      %v350 = vld [vmem:[#allocation10 + $0x10] sm:$0xf]
      %v351 = vld [vmem:[#allocation10 + $0x14] sm:$0xf]
      %v352 = vld [vmem:[#allocation10 + $0x18] sm:$0xf]
      %v353 = vld [vmem:[#allocation10 + $0x1c] sm:$0xf]
      %v354 = vld [vmem:[#allocation10 + $0x20] sm:$0xf]
      %v355 = vld [vmem:[#allocation10 + $0x24] sm:$0xf]
      %v356 = vld [vmem:[#allocation10 + $0x28] sm:$0xf]
      %v357 = vld [vmem:[#allocation10 + $0x2c] sm:$0xf]
      %v358 = vld [vmem:[#allocation10 + $0x30] sm:$0xf]
      %v359 = vld [vmem:[#allocation10 + $0x34] sm:$0xf]
      %v360 = vld [vmem:[#allocation10 + $0x38] sm:$0xf]
      %v361 = vld [vmem:[#allocation10 + $0x3c] sm:$0xf]
      %v378 = vunpack.c.l.b16 %v346
      %v379 = vunpack.c.l.b16 %v347
      %v380 = vunpack.c.l.b16 %v348
      %v381 = vunpack.c.l.b16 %v349
      %v382 = vunpack.c.l.b16 %v350
      %v383 = vunpack.c.l.b16 %v351
      %v384 = vunpack.c.l.b16 %v352
      %v385 = vunpack.c.l.b16 %v353
      %v386 = vunpack.c.l.b16 %v354
      %v387 = vunpack.c.l.b16 %v355
      %v388 = vunpack.c.l.b16 %v356
      %v389 = vunpack.c.l.b16 %v357
      %v390 = vunpack.c.l.b16 %v358
      %v391 = vunpack.c.l.b16 %v359
      %v392 = vunpack.c.l.b16 %v360
      %v393 = vunpack.c.l.b16 %v361
      %v394 = vpack.c.b16 %v379, %v378
      %v395 = vpack.c.b16 %v381, %v380
      %v396 = vpack.c.b16 %v383, %v382
      %v397 = vpack.c.b16 %v385, %v384
      %v398 = vpack.c.b16 %v387, %v386
      %v399 = vpack.c.b16 %v389, %v388
      %v400 = vpack.c.b16 %v391, %v390
      %v401 = vpack.c.b16 %v393, %v392
      %410 = vmatprep.subr.bf16.mxu0 0
      %411 = vmatpush1.bf16.msra.mxu0 %v394
      %412 = vmatprep.subr.bf16.mxu0 0
      %413 = vmatpush1.bf16.msra.mxu0 %v395
      %414 = vmatprep.subr.bf16.mxu0 0
      %415 = vmatpush1.bf16.msra.mxu0 %v396
      %416 = vmatprep.subr.bf16.mxu0 0
      %417 = vmatpush1.bf16.msra.mxu0 %v397
      %418 = vmatprep.subr.bf16.mxu0 0
      %419 = vmatpush1.bf16.msra.mxu0 %v398
      %420 = vmatprep.subr.bf16.mxu0 0
      %421 = vmatpush1.bf16.msra.mxu0 %v399
      %422 = vmatprep.subr.bf16.mxu0 0
      %423 = vmatpush1.bf16.msra.mxu0 %v400
      %424 = vmatprep.subr.bf16.mxu0 0
      %425 = vmatpush1.bf16.msra.mxu0 %v401
      %426 = vmatprep.subr.bf16.mxu0 0
      %427 = vmatpush1.bf16.msra.mxu0 0
      %428 = vmatprep.subr.bf16.mxu0 0
      %429 = vmatpush1.bf16.msra.mxu0 0
      %430 = vmatprep.subr.bf16.mxu0 0
      %431 = vmatpush1.bf16.msra.mxu0 0
      %432 = vmatprep.subr.bf16.mxu0 0
      %433 = vmatpush1.bf16.msra.mxu0 0
      %434 = vmatprep.subr.bf16.mxu0 0
      %435 = vmatpush1.bf16.msra.mxu0 0
      %436 = vmatprep.subr.bf16.mxu0 0
      %437 = vmatpush1.bf16.msra.mxu0 0
      %438 = vmatprep.subr.bf16.mxu0 0
      %439 = vmatpush1.bf16.msra.mxu0 0
      %440 = vmatprep.subr.bf16.mxu0 0
      %441 = vmatpush1.bf16.msra.mxu0 0
      %442 = vmatprep.mubr.bf16.mxu0 0
      %443 = vmatmul.mubr.bf16.gmra.mrb[0].mxu0 %v342
      %v444 = vpop.f32.mrb[0].mxu0
      %v445 = vadd.f32 0.0, %v444
      %v446 = vpop.f32.mrb[0].mxu0
      %v447 = vpop.f32.mrb[0].mxu0
      %v448 = vadd.f32 0.0, %v447
      %v449 = vpop.f32.mrb[0].mxu0
      %450 = vmatprep.mubr.bf16.mxu0 0
      %451 = vmatmul.mubr.bf16.gmra.mrb[0].mxu0 %v343
      %v452 = vpop.f32.mrb[0].mxu0
      %v453 = vadd.f32 0.0, %v452
      %v454 = vpop.f32.mrb[0].mxu0
      %v455 = vpop.f32.mrb[0].mxu0
      %v456 = vadd.f32 0.0, %v455
      %v457 = vpop.f32.mrb[0].mxu0
      %458 = vmatprep.mubr.bf16.mxu0 0
      %459 = vmatmul.mubr.bf16.gmra.mrb[0].mxu0 %v344
      %v460 = vpop.f32.mrb[0].mxu0
      %v461 = vadd.f32 0.0, %v460
      %v462 = vpop.f32.mrb[0].mxu0
      %v463 = vpop.f32.mrb[0].mxu0
      %v464 = vadd.f32 0.0, %v463
      %v465 = vpop.f32.mrb[0].mxu0
      %466 = vmatprep.mubr.bf16.mxu0 0
      %467 = vmatmul.mubr.bf16.gmra.mrb[0].mxu0 %v345
      %v468 = vpop.f32.mrb[0].mxu0
      %v469 = vadd.f32 0.0, %v468
      %v470 = vpop.f32.mrb[0].mxu0
      %v471 = vpop.f32.mrb[0].mxu0
      %v472 = vadd.f32 0.0, %v471
      %v473 = vpop.f32.mrb[0].mxu0
      %474 = vdwg.mxu0
      %v475 = vpack.c.bf16 %v448, %v445
      %v476 = vpack.c.bf16 %v456, %v453
      %v477 = vpack.c.bf16 %v464, %v461
      %v478 = vpack.c.bf16 %v472, %v469
      %479 = vst [vmem:[#allocation2] sm:$0xff] %v475
      %480 = vst [vmem:[#allocation2 + $0x8] sm:$0xff] %v476
      %481 = vst [vmem:[#allocation2 + $0x10] sm:$0xff] %v477
      %482 = vst [vmem:[#allocation2 + $0x18] sm:$0xff] %v478
      %483 = vst [vmem:[#allocation3] sm:$0xff] 0.0
    $region53: #{tpu_custom_call.1} parent=1 // pred_fallthru
      _
    %v484 = vld [vmem:[%s6 + $0x3] sm:$0x1]
    %v485 = vld [vmem:[#allocation7] sm:$0xf]
    %v486 = vld [vmem:[#allocation7 + $0x4] sm:$0xf]
    %v487 = vld [vmem:[#allocation7 + $0x8] sm:$0xf]
    %v488 = vld [vmem:[#allocation7 + $0xc] sm:$0xf]
    %v489 = vld [vmem:[#allocation7 + $0x10] sm:$0xf]
    %v490 = vld [vmem:[#allocation7 + $0x14] sm:$0xf]
    %v491 = vld [vmem:[#allocation7 + $0x18] sm:$0xf]
    %v492 = vld [vmem:[#allocation7 + $0x1c] sm:$0xf]
    %v493 = vld [vmem:[#allocation2] sm:$0xff]
    %v494 = vld [vmem:[#allocation2 + $0x8] sm:$0xff]
    %v495 = vld [vmem:[#allocation2 + $0x10] sm:$0xff]
    %v496 = vld [vmem:[#allocation2 + $0x18] sm:$0xff]
    %v497 = vlaneseq
    %v498 = vshrl.u32 %v497, 7
    %v499 = vsub.s32 0, %v498
    %v500 = vrot.slane %v484, %v499
    %v509 = vunpack.c.l.b16 %v485
    %v510 = vunpack.c.l.b16 %v486
    %v511 = vunpack.c.l.b16 %v487
    %v512 = vunpack.c.l.b16 %v488
    %v513 = vunpack.c.l.b16 %v489
    %v514 = vunpack.c.l.b16 %v490
    %v515 = vunpack.c.l.b16 %v491
    %v516 = vunpack.c.l.b16 %v492
    %v517 = vpack.c.b16 %v510, %v509
    %v518 = vpack.c.b16 %v512, %v511
    %v519 = vpack.c.b16 %v514, %v513
    %v520 = vpack.c.b16 %v516, %v515
    %vm521 = vcmask 523264
    %v523 = vsel %vm521, %v517, 0
    %v526 = vsel %vm521, %v518, 0
    %v529 = vsel %vm521, %v519, 0
    %v532 = vsel %vm521, %v520, 0
    %534 = vmatprep.subr.bf16.mxu0 0
    %535 = vmatpush1.bf16.msra.mxu0 %v493
    %536 = vmatprep.subr.bf16.mxu0 0
    %537 = vmatpush1.bf16.msra.mxu0 %v494
    %538 = vmatprep.subr.bf16.mxu0 0
    %539 = vmatpush1.bf16.msra.mxu0 %v495
    %540 = vmatprep.subr.bf16.mxu0 0
    %541 = vmatpush1.bf16.msra.mxu0 %v496
    %542 = vmatprep.subr.bf16.mxu0 0
    %543 = vmatpush1.bf16.msra.mxu0 0
    %544 = vmatprep.subr.bf16.mxu0 0
    %545 = vmatpush1.bf16.msra.mxu0 0
    %546 = vmatprep.subr.bf16.mxu0 0
    %547 = vmatpush1.bf16.msra.mxu0 0
    %548 = vmatprep.subr.bf16.mxu0 0
    %549 = vmatpush1.bf16.msra.mxu0 0
    %550 = vmatprep.subr.bf16.mxu0 0
    %551 = vmatpush1.bf16.msra.mxu0 0
    %552 = vmatprep.subr.bf16.mxu0 0
    %553 = vmatpush1.bf16.msra.mxu0 0
    %554 = vmatprep.subr.bf16.mxu0 0
    %555 = vmatpush1.bf16.msra.mxu0 0
    %556 = vmatprep.subr.bf16.mxu0 0
    %557 = vmatpush1.bf16.msra.mxu0 0
    %558 = vmatprep.subr.bf16.mxu0 0
    %559 = vmatpush1.bf16.msra.mxu0 0
    %560 = vmatprep.subr.bf16.mxu0 0
    %561 = vmatpush1.bf16.msra.mxu0 0
    %562 = vmatprep.subr.bf16.mxu0 0
    %563 = vmatpush1.bf16.msra.mxu0 0
    %564 = vmatprep.subr.bf16.mxu0 0
    %565 = vmatpush1.bf16.msra.mxu0 0
    %566 = vmatprep.mubr.bf16.mxu0 0
    %567 = vmatmul.mubr.bf16.gmra.mrb[0].mxu0 %v523
    %v568 = vpop.f32.mrb[0].mxu0
    %v569 = vadd.f32 %v500, %v568
    %v570 = vpop.f32.mrb[0].mxu0
    %v571 = vpop.f32.mrb[0].mxu0
    %v572 = vadd.f32 %v500, %v571
    %v573 = vpop.f32.mrb[0].mxu0
    %574 = vmatprep.mubr.bf16.mxu0 0
    %575 = vmatmul.mubr.bf16.gmra.mrb[0].mxu0 %v526
    %v576 = vpop.f32.mrb[0].mxu0
    %v577 = vadd.f32 %v500, %v576
    %v578 = vpop.f32.mrb[0].mxu0
    %v579 = vpop.f32.mrb[0].mxu0
    %v580 = vadd.f32 %v500, %v579
    %v581 = vpop.f32.mrb[0].mxu0
    %582 = vmatprep.mubr.bf16.mxu0 0
    %583 = vmatmul.mubr.bf16.gmra.mrb[0].mxu0 %v529
    %v584 = vpop.f32.mrb[0].mxu0
    %v585 = vadd.f32 %v500, %v584
    %v586 = vpop.f32.mrb[0].mxu0
    %v587 = vpop.f32.mrb[0].mxu0
    %v588 = vadd.f32 %v500, %v587
    %v589 = vpop.f32.mrb[0].mxu0
    %590 = vmatprep.mubr.bf16.mxu0 0
    %591 = vmatmul.mubr.bf16.gmra.mrb[0].mxu0 %v532
    %v592 = vpop.f32.mrb[0].mxu0
    %v593 = vadd.f32 %v500, %v592
    %v594 = vpop.f32.mrb[0].mxu0
    %v595 = vpop.f32.mrb[0].mxu0
    %v596 = vadd.f32 %v500, %v595
    %v597 = vpop.f32.mrb[0].mxu0
    %598 = vdwg.mxu0
    %v599 = vpack.c.bf16 %v572, %v569
    %v600 = vpack.c.bf16 %v580, %v577
    %v601 = vpack.c.bf16 %v588, %v585
    %v602 = vpack.c.bf16 %v596, %v593
    %v603 = vld [vmem:[#allocation12] sm:$0xf]
    %v604 = vld [vmem:[#allocation12 + $0x4] sm:$0xf]
    %v605 = vld [vmem:[#allocation12 + $0x8] sm:$0xf]
    %v606 = vld [vmem:[#allocation12 + $0xc] sm:$0xf]
    %v607 = vld [vmem:[#allocation12 + $0x10] sm:$0xf]
    %v608 = vld [vmem:[#allocation12 + $0x14] sm:$0xf]
    %v609 = vld [vmem:[#allocation12 + $0x18] sm:$0xf]
    %v610 = vld [vmem:[#allocation12 + $0x1c] sm:$0xf]
    %v611 = vld [vmem:[#allocation12 + $0x20] sm:$0xf]
    %v612 = vld [vmem:[#allocation12 + $0x24] sm:$0xf]
    %v613 = vld [vmem:[#allocation12 + $0x28] sm:$0xf]
    %v614 = vld [vmem:[#allocation12 + $0x2c] sm:$0xf]
    %v615 = vld [vmem:[#allocation12 + $0x30] sm:$0xf]
    %v616 = vld [vmem:[#allocation12 + $0x34] sm:$0xf]
    %v617 = vld [vmem:[#allocation12 + $0x38] sm:$0xf]
    %v618 = vld [vmem:[#allocation12 + $0x3c] sm:$0xf]
    %v635 = vunpack.c.l.b16 %v603
    %v636 = vunpack.c.l.b16 %v604
    %v637 = vunpack.c.l.b16 %v605
    %v638 = vunpack.c.l.b16 %v606
    %v639 = vunpack.c.l.b16 %v607
    %v640 = vunpack.c.l.b16 %v608
    %v641 = vunpack.c.l.b16 %v609
    %v642 = vunpack.c.l.b16 %v610
    %v643 = vunpack.c.l.b16 %v611
    %v644 = vunpack.c.l.b16 %v612
    %v645 = vunpack.c.l.b16 %v613
    %v646 = vunpack.c.l.b16 %v614
    %v647 = vunpack.c.l.b16 %v615
    %v648 = vunpack.c.l.b16 %v616
    %v649 = vunpack.c.l.b16 %v617
    %v650 = vunpack.c.l.b16 %v618
    %v651 = vpack.c.b16 %v636, %v635
    %v652 = vpack.c.b16 %v638, %v637
    %v653 = vpack.c.b16 %v640, %v639
    %v654 = vpack.c.b16 %v642, %v641
    %v655 = vpack.c.b16 %v644, %v643
    %v656 = vpack.c.b16 %v646, %v645
    %v657 = vpack.c.b16 %v648, %v647
    %v658 = vpack.c.b16 %v650, %v649
    %667 = vmatprep.subr.bf16.mxu0 0
    %668 = vmatpush1.bf16.msra.mxu0 %v651
    %669 = vmatprep.subr.bf16.mxu0 0
    %670 = vmatpush1.bf16.msra.mxu0 %v652
    %671 = vmatprep.subr.bf16.mxu0 0
    %672 = vmatpush1.bf16.msra.mxu0 %v653
    %673 = vmatprep.subr.bf16.mxu0 0
    %674 = vmatpush1.bf16.msra.mxu0 %v654
    %675 = vmatprep.subr.bf16.mxu0 0
    %676 = vmatpush1.bf16.msra.mxu0 %v655
    %677 = vmatprep.subr.bf16.mxu0 0
    %678 = vmatpush1.bf16.msra.mxu0 %v656
    %679 = vmatprep.subr.bf16.mxu0 0
    %680 = vmatpush1.bf16.msra.mxu0 %v657
    %681 = vmatprep.subr.bf16.mxu0 0
    %682 = vmatpush1.bf16.msra.mxu0 %v658
    %683 = vmatprep.subr.bf16.mxu0 0
    %684 = vmatpush1.bf16.msra.mxu0 0
    %685 = vmatprep.subr.bf16.mxu0 0
    %686 = vmatpush1.bf16.msra.mxu0 0
    %687 = vmatprep.subr.bf16.mxu0 0
    %688 = vmatpush1.bf16.msra.mxu0 0
    %689 = vmatprep.subr.bf16.mxu0 0
    %690 = vmatpush1.bf16.msra.mxu0 0
    %691 = vmatprep.subr.bf16.mxu0 0
    %692 = vmatpush1.bf16.msra.mxu0 0
    %693 = vmatprep.subr.bf16.mxu0 0
    %694 = vmatpush1.bf16.msra.mxu0 0
    %695 = vmatprep.subr.bf16.mxu0 0
    %696 = vmatpush1.bf16.msra.mxu0 0
    %697 = vmatprep.subr.bf16.mxu0 0
    %698 = vmatpush1.bf16.msra.mxu0 0
    %699 = vmatprep.mubr.bf16.mxu0 0
    %700 = vmatmul.mubr.bf16.gmra.mrb[0].mxu0 %v599
    %v701 = vpop.f32.mrb[0].mxu0
    %v702 = vadd.f32 0.0, %v701
    %v703 = vpop.f32.mrb[0].mxu0
    %v704 = vpop.f32.mrb[0].mxu0
    %v705 = vadd.f32 0.0, %v704
    %v706 = vpop.f32.mrb[0].mxu0
    %707 = vmatprep.mubr.bf16.mxu0 0
    %708 = vmatmul.mubr.bf16.gmra.mrb[0].mxu0 %v600
    %v709 = vpop.f32.mrb[0].mxu0
    %v710 = vadd.f32 0.0, %v709
    %v711 = vpop.f32.mrb[0].mxu0
    %v712 = vpop.f32.mrb[0].mxu0
    %v713 = vadd.f32 0.0, %v712
    %v714 = vpop.f32.mrb[0].mxu0
    %715 = vmatprep.mubr.bf16.mxu0 0
    %716 = vmatmul.mubr.bf16.gmra.mrb[0].mxu0 %v601
    %v717 = vpop.f32.mrb[0].mxu0
    %v718 = vadd.f32 0.0, %v717
    %v719 = vpop.f32.mrb[0].mxu0
    %v720 = vpop.f32.mrb[0].mxu0
    %v721 = vadd.f32 0.0, %v720
    %v722 = vpop.f32.mrb[0].mxu0
    %723 = vmatprep.mubr.bf16.mxu0 0
    %724 = vmatmul.mubr.bf16.gmra.mrb[0].mxu0 %v602
    %v725 = vpop.f32.mrb[0].mxu0
    %v726 = vadd.f32 0.0, %v725
    %v727 = vpop.f32.mrb[0].mxu0
    %v728 = vpop.f32.mrb[0].mxu0
    %v729 = vadd.f32 0.0, %v728
    %v730 = vpop.f32.mrb[0].mxu0
    %731 = vdwg.mxu0
    %v732 = vld [vmem:[#allocation3] sm:$0xff]
    %v733 = vld [vmem:[%s2] sm:$0xf]
    %v734 = vpack.c.bf16 %v705, %v702
    %v735 = vpack.c.bf16 %v713, %v710
    %v736 = vpack.c.bf16 %v721, %v718
    %v737 = vpack.c.bf16 %v729, %v726
    %v739 = vsel %vm521, %v733, 0
    %741 = vmatprep.subr.bf16.mxu0 0
    %742 = vmatpush1.bf16.msra.mxu0 %v734
    %743 = vmatprep.subr.bf16.mxu0 0
    %744 = vmatpush1.bf16.msra.mxu0 %v735
    %745 = vmatprep.subr.bf16.mxu0 0
    %746 = vmatpush1.bf16.msra.mxu0 %v736
    %747 = vmatprep.subr.bf16.mxu0 0
    %748 = vmatpush1.bf16.msra.mxu0 %v737
    %749 = vmatprep.subr.bf16.mxu0 0
    %750 = vmatpush1.bf16.msra.mxu0 0
    %751 = vmatprep.subr.bf16.mxu0 0
    %752 = vmatpush1.bf16.msra.mxu0 0
    %753 = vmatprep.subr.bf16.mxu0 0
    %754 = vmatpush1.bf16.msra.mxu0 0
    %755 = vmatprep.subr.bf16.mxu0 0
    %756 = vmatpush1.bf16.msra.mxu0 0
    %757 = vmatprep.subr.bf16.mxu0 0
    %758 = vmatpush1.bf16.msra.mxu0 0
    %759 = vmatprep.subr.bf16.mxu0 0
    %760 = vmatpush1.bf16.msra.mxu0 0
    %761 = vmatprep.subr.bf16.mxu0 0
    %762 = vmatpush1.bf16.msra.mxu0 0
    %763 = vmatprep.subr.bf16.mxu0 0
    %764 = vmatpush1.bf16.msra.mxu0 0
    %765 = vmatprep.subr.bf16.mxu0 0
    %766 = vmatpush1.bf16.msra.mxu0 0
    %767 = vmatprep.subr.bf16.mxu0 0
    %768 = vmatpush1.bf16.msra.mxu0 0
    %769 = vmatprep.subr.bf16.mxu0 0
    %770 = vmatpush1.bf16.msra.mxu0 0
    %771 = vmatprep.subr.bf16.mxu0 0
    %772 = vmatpush1.bf16.msra.mxu0 0
    %773 = vmatprep.mubr.bf16.mxu0 0
    %774 = vmatmul.mubr.bf16.gmra.mrb[0].mxu0 %v739
    %v775 = vpop.f32.mrb[0].mxu0
    %v776 = vadd.f32 0.0, %v775
    %v777 = vpop.f32.mrb[0].mxu0
    %v778 = vpop.f32.mrb[0].mxu0
    %v779 = vpop.f32.mrb[0].mxu0
    %780 = vdwg.mxu0
    %v781 = vadd.f32 %v732, %v776
    %782 = vst [vmem:[#allocation3] sm:$0xff] %v781
    // Predicated region
    $region54: #{tpu_custom_call.1} parent=1 // pred_check
      %p783 = pneg %p96
    $region55: #{tpu_custom_call.1} parent=1 // pred_check_branch
      %785 = sbr.rel (%p783) target = $region57
    $region56: #{tpu_custom_call.1} parent=1 // pred_region
      %v786 = vld [vmem:[%s6 + $0x4] sm:$0x1]
      %v787 = vld [vmem:[#allocation3] sm:$0xff]
      %v788 = vlaneseq
      %v789 = vshrl.u32 %v788, 7
      %v790 = vsub.s32 0, %v789
      %v791 = vrot.slane %v786, %v790
      %v792 = vadd.f32 %v787, %v791
      %793 = vst [vmem:[#allocation13] sm:$0xff] %v792
    $region57: #{tpu_custom_call.1} parent=1 // pred_fallthru
      _
    // Predicated region
    $region58: #{tpu_custom_call.1} parent=1 // pred_check
      _
    $region59: #{tpu_custom_call.1} parent=1 // pred_check_branch
      %795 = sbr.rel (0) target = $region61
    $region60: #{tpu_custom_call.1} parent=1 // pred_region
      %s797 = ssub.s32 128, 128
      %798 = vsyncadd [#allocation6], %s797
      %s800 = sshll.u32 [#allocation13], 4
      %s801 = int_to_ptr.vmem [resolvable:$true] %s800
      %803 = dma.vmem_to_hbm [thread:$0]  %s801, 128, %s7, [#allocation6]
    $region61: #{tpu_custom_call.1} parent=1 // pred_fallthru
      _
    // Predicated region
    $region62: #{tpu_custom_call.1} parent=1 // pred_check
      _
    $region63: #{tpu_custom_call.1} parent=1 // pred_check_branch
      %805 = sbr.rel (0) target = $region65
    $region64: #{tpu_custom_call.1} parent=1 // pred_region
      %806 = dma.done [#allocation6], 128
    $region65: #{tpu_custom_call.1} parent=1 // pred_fallthru
      _
    %807 = vsyncpa [#allocation5], 1
    %808 = vsyncpa [#allocation8], 1
    %809 = vsyncpa [#allocation11], 1
    %810 = vsyncpa [#allocation6], 1

</llo_original>
